<compile_context>
chip_gen: v6e
topology: v6e:2x2x1
jax: 0.10.0
libtpu: 0.0.40
codegen_flags: <defaults>
</compile_context>

<pallas_src>
import functools
import math

import jax
import jax.numpy as jnp
from jax.experimental import pallas as pl
from jax.experimental.pallas import tpu as pltpu


# ----------------------------------------------------------------------------
# Fast sine: Cody-Waite range reduction to [-pi/2, pi/2] + odd poly (deg 11).
# Max abs error ~6e-8 for moderate |x| -- indistinguishable from jnp.sin at
# the f32 tolerances PINNs care about, but much cheaper on the VALU slot.
# ----------------------------------------------------------------------------
_INV_PI = 0.3183098861837907
_PI_A = 3.140625                      # exact in f32
_PI_B = 0.0009670257568359375         # exact in f32
_PI_C = 6.2771141529083252e-07


def _fast_sin(x):
    # k = round(x / pi); r = x - k*pi  in [-pi/2, pi/2]; sin(x) = (-1)^k sin(r)
    k = jnp.floor(x * _INV_PI + 0.5)
    r = x - k * _PI_A
    r = r - k * _PI_B
    r = r - k * _PI_C
    r2 = r * r
    p = -2.5052108385441720e-08                      # -1/11!
    p = p * r2 + 2.7557319223985893e-06              #  1/9!
    p = p * r2 + -1.9841269841269841e-04             # -1/7!
    p = p * r2 + 8.3333333333333333e-03              #  1/5!
    p = p * r2 + -1.6666666666666666e-01             # -1/3!
    s = r + r * r2 * p
    parity = k - 2.0 * jnp.floor(k * 0.5)            # k mod 2 in {0, 1}
    sign = 1.0 - 2.0 * parity
    return sign * s


# ----------------------------------------------------------------------------
# Pallas kernel: fused MLP forward, feature-major (features x batch_block)
# ----------------------------------------------------------------------------
def _pinn_kernel(num_layers, use_bf16, xt_ref, w0x_ref, w0t_ref, b0_ref, *refs):
    """refs = (w1, b1, ..., w_{L-1}, b_{L-1}, out_ref).

    Weights (layers >= 1) are feature-major: w_l is (out_f, in_f), b_l (out_f, 1).
    Activations are (features, block_n): the batch rides the lane axis, so
    every vreg / MXU op is lane-dense and the output store is unmasked.
    """
    out_ref = refs[-1]
    p = refs[:-1]

    xt = xt_ref[...]                                  # (2, block_n) f32
    x = xt[0:1, :]
    t = xt[1:2, :]

    # Layer 0: fused concat + Linear as two sublane-broadcast FMAs (a K=2 MXU
    # matmul would waste ~98% of the contraction depth).
    h = w0x_ref[...] * x + w0t_ref[...] * t + b0_ref[...]   # (h0, block_n)

    # Remaining layers: sin() then Linear on the MXU with lane-dense N.
    for layer in range(1, num_layers):
        if use_bf16:
            h = h.astype(jnp.bfloat16)
        h = _fast_sin(h)
        w = p[2 * (layer - 1)][...]                   # (out_f, in_f)
        b = p[2 * (layer - 1) + 1][...]               # (out_f, 1) f32
        h = jnp.dot(w, h, preferred_element_type=jnp.float32) + b

    out_ref[...] = h.astype(out_ref.dtype)            # (out_dim, block_n)


# ----------------------------------------------------------------------------
# Wrapper
# ----------------------------------------------------------------------------
def raw_pinn_forward(x, t, params, *, F=False, block_n=4096, use_bf16=False):
    """JAX/Pallas equivalent of rawPINN.forward.

    x, t:   (N, 1) float32 (F=False) or (B, S, 1) float32 (F=True)
    params: list of (W, b) with W: (in_features, out_features), b: (out_features,)
            (numerically identical to PyTorch's x @ W_pt.T + b with W = W_pt.T)
    use_bf16: optional bf16 hidden path for v6e/v7x (changes PINN numerics).
    """
    x = jnp.asarray(x, jnp.float32)
    t = jnp.asarray(t, jnp.float32)
    assert x.shape[-1] == 1 and t.shape[-1] == 1, "PINN inputs must be (..., 1)"
    assert params[0][0].shape[0] == 2, "first layer must consume the 2 features (x, t)"

    lead_shape = x.shape[:-1]
    n = math.prod(lead_shape)
    out_dim = params[-1][0].shape[1]
    num_layers = len(params)
    max_width = max(max(w.shape) for w, _ in params)

    # ---- block size selection (batch rides the 128-wide lane axis) --------
    lane = 128
    n_pad_lane = ((n + lane - 1) // lane) * lane
    # keep >= ~4 grid steps so both v7x TensorCores get work + DMA pipelining
    target_block = max(lane, ((n_pad_lane // 4) // lane) * lane)
    block_n = min(block_n, target_block)
    # VMEM safety cap: ~6 live (max_width, block_n) f32 temps <= ~8 MiB (v5e default)
    vmem_cap_block = max(lane, ((8 * 1024 * 1024) // (6 * 4 * max_width) // lane) * lane)
    block_n = min(block_n, vmem_cap_block)
    block_n = max(lane, (block_n // lane) * lane)
    n_blocks = pl.cdiv(n, block_n)
    n_pad = n_blocks * block_n

    # ---- operand packing ---------------------------------------------------
    # x, t stacked into one (2, N_pad) operand: one input DMA per grid step.
    x_row = x.reshape(1, n)
    t_row = t.reshape(1, n)
    if n_pad != n:
        x_row = jnp.pad(x_row, ((0, 0), (0, n_pad - n)))
        t_row = jnp.pad(t_row, ((0, 0), (0, n_pad - n)))
    xt = jnp.concatenate((x_row, t_row), axis=0)           # (2, n_pad)

    # Layer 0 pre-split into two (h0, 1) columns + bias (no in-kernel slicing).
    w0, b0 = params[0]
    w0 = jnp.asarray(w0, jnp.float32)                       # (2, h0)
    w0x = w0[0].reshape(-1, 1)                              # (h0, 1)
    w0t = w0[1].reshape(-1, 1)                              # (h0, 1)
    b0c = jnp.asarray(b0, jnp.float32).reshape(-1, 1)       # (h0, 1)

    # Remaining layers, feature-major: W -> (out_f, in_f), b -> (out_f, 1).
    hid_dtype = jnp.bfloat16 if use_bf16 else jnp.float32
    rest = []
    for (w, b) in params[1:]:
        rest.append(jnp.asarray(w, jnp.float32).T.astype(hid_dtype))
        rest.append(jnp.asarray(b, jnp.float32).reshape(-1, 1))

    # ---- specs --------------------------------------------------------------
    xt_spec = pl.BlockSpec((2, block_n), lambda i: (0, i))

    def resident(shape):
        # Full-array block, constant index -> stays resident in VMEM across steps.
        return pl.BlockSpec(shape, lambda i: (0, 0))

    in_specs = ([xt_spec]
                + [resident(w0x.shape), resident(w0t.shape), resident(b0c.shape)]
                + [resident(p.shape) for p in rest])
    out_spec = pl.BlockSpec((out_dim, block_n), lambda i: (0, i))

    # ---- advisory cost + compiler params ------------------------------------
    flops = sum(2 * n_pad * w.shape[0] * w.shape[1] + n_pad * w.shape[1]
                for w, _ in params)
    transcendentals = n_pad * sum(w.shape[1] for w, _ in params[:-1])
    param_bytes = (w0x.size + w0t.size + b0c.size) * 4 + sum(
        p.size * p.dtype.itemsize for p in rest)
    bytes_accessed = 4 * n_pad * (2 + out_dim) + param_bytes

    io_bytes = 2 * (2 * block_n * 4 + out_dim * block_n * 4)   # double-buffered I/O
    act_bytes = 6 * max_width * block_n * 4                    # live activation temps
    vmem_est = io_bytes + act_bytes + param_bytes
    compiler_kwargs = dict(dimension_semantics=("parallel",))
    if vmem_est > 12 * 1024 * 1024:
        compiler_kwargs["vmem_limit_bytes"] = int(min(vmem_est + (4 << 20), 48 << 20))

    kernel = functools.partial(_pinn_kernel, num_layers, use_bf16)

    out = pl.pallas_call(
        kernel,
        grid=(n_blocks,),
        in_specs=in_specs,
        out_specs=out_spec,
        out_shape=jax.ShapeDtypeStruct((out_dim, n_pad), jnp.float32),
        compiler_params=pltpu.CompilerParams(**compiler_kwargs),
        cost_estimate=pl.CostEstimate(
            flops=flops,
            transcendentals=transcendentals,
            bytes_accessed=bytes_accessed),
    )(xt, w0x, w0t, b0c, *rest)

    # (out_dim, n_pad) -> drop padding -> (*lead_shape, out_dim)
    return out[:, :n].T.reshape(*lead_shape, out_dim)


# ----------------------------------------------------------------------------
# Deterministic parameter construction (Xavier-normal style, synthetic)
# ----------------------------------------------------------------------------
def make_params(key, layer_structure):
    """nn.Linear(in, out) per consecutive pair; all layers have bias."""
    params = []
    for i in range(len(layer_structure) - 1):
        fan_in, fan_out = layer_structure[i], layer_structure[i + 1]
        key, wk = jax.random.split(key)
        std = (2.0 / (fan_in + fan_out)) ** 0.5          # xavier_normal_
        w = std * jax.random.normal(wk, (fan_in, fan_out), dtype=jnp.float32)
        b = jnp.zeros((fan_out,), dtype=jnp.float32)
        params.append((w, b))
    return params


def raw_pinn_reference(x, t, params, *, F=False):
    """Pure-JAX reference for correctness checking."""
    h = jnp.concatenate((x, t), axis=2 if F else 1)
    for i, (w, b) in enumerate(params):
        h = h @ w + b
        if i != len(params) - 1:
            h = jnp.sin(h)
    return h


if __name__ == "__main__":
    # MLP_layer_structure = [2, 32, 32, 1]: (x, t) -> hidden 32 -> hidden 32 -> u
    layer_structure = [2, 32, 32, 1]

    key = jax.random.PRNGKey(0)
    key, kx, kt, kp = jax.random.split(key, 4)
    params = make_params(kp, layer_structure)

    # 2-D case (F=False); non-multiple-of-block batch exercises padding + grid.
    batch = 1000
    x = jax.random.normal(kx, (batch, 1), dtype=jnp.float32)
    t = jax.random.normal(kt, (batch, 1), dtype=jnp.float32)
    out = jax.block_until_ready(raw_pinn_forward(x, t, params, F=False))
    ref = raw_pinn_reference(x, t, params, F=False)
    assert out.shape == (batch, 1), out.shape
    assert jnp.allclose(out, ref, atol=1e-5, rtol=1e-5)

    # 3-D case (F=True): concat along dim=2.
    key, kx2, kt2 = jax.random.split(key, 3)
    x3 = jax.random.normal(kx2, (4, 8, 1), dtype=jnp.float32)
    t3 = jax.random.normal(kt2, (4, 8, 1), dtype=jnp.float32)
    out3 = jax.block_until_ready(raw_pinn_forward(x3, t3, params, F=True))
    ref3 = raw_pinn_reference(x3, t3, params, F=True)
    assert out3.shape == (4, 8, 1), out3.shape
    assert jnp.allclose(out3, ref3, atol=1e-5, rtol=1e-5)

    print("KERNEL_OK")
</pallas_src>

<mosaic_0001>
module attributes {stable_mosaic.version = 11 : i64} {
  func.func @_pinn_kernel(%arg0: i32, %arg1: memref<2x256xf32, #tpu.memory_space<vmem>>, %arg2: memref<32x1xf32, #tpu.memory_space<vmem>>, %arg3: memref<32x1xf32, #tpu.memory_space<vmem>>, %arg4: memref<32x1xf32, #tpu.memory_space<vmem>>, %arg5: memref<32x32xf32, #tpu.memory_space<vmem>>, %arg6: memref<32x1xf32, #tpu.memory_space<vmem>>, %arg7: memref<1x32xf32, #tpu.memory_space<vmem>>, %arg8: memref<1x1xf32, #tpu.memory_space<vmem>>, %arg9: memref<1x256xf32, #tpu.memory_space<vmem>>) attributes {dimension_semantics = [#tpu.dimension_semantics<parallel>], iteration_bounds = array<i64: 4>, scalar_prefetch = 0 : i64, scratch_operands = 0 : i64, tpu.core_type = #tpu.core_type<tc>, window_params = [{transform_indices = @transform_0, window_bounds = array<i64: 2, 256>}, {pipeline_mode = #tpu.pipeline_mode<synchronous>, transform_indices = @transform_1, window_bounds = array<i64: 32, 1>}, {pipeline_mode = #tpu.pipeline_mode<synchronous>, transform_indices = @transform_2, window_bounds = array<i64: 32, 1>}, {pipeline_mode = #tpu.pipeline_mode<synchronous>, transform_indices = @transform_3, window_bounds = array<i64: 32, 1>}, {pipeline_mode = #tpu.pipeline_mode<synchronous>, transform_indices = @transform_4, window_bounds = array<i64: 32, 32>}, {pipeline_mode = #tpu.pipeline_mode<synchronous>, transform_indices = @transform_5, window_bounds = array<i64: 32, 1>}, {pipeline_mode = #tpu.pipeline_mode<synchronous>, transform_indices = @transform_6, window_bounds = array<i64: 1, 32>}, {pipeline_mode = #tpu.pipeline_mode<synchronous>, transform_indices = @transform_7, window_bounds = array<i64: 1, 1>}, {transform_indices = @transform_8, window_bounds = array<i64: 1, 256>}]} {
    %c0 = arith.constant 0 : index
    %c0_0 = arith.constant 0 : index
    %0 = vector.load %arg1[%c0, %c0_0] : memref<2x256xf32, #tpu.memory_space<vmem>>, vector<2x256xf32>
    %1 = vector.extract_strided_slice %0 {offsets = [0, 0], sizes = [1, 256], strides = [1, 1]} : vector<2x256xf32> to vector<1x256xf32>
    %2 = vector.extract_strided_slice %0 {offsets = [1, 0], sizes = [1, 256], strides = [1, 1]} : vector<2x256xf32> to vector<1x256xf32>
    %c0_1 = arith.constant 0 : index
    %c0_2 = arith.constant 0 : index
    %3 = vector.load %arg2[%c0_1, %c0_2] : memref<32x1xf32, #tpu.memory_space<vmem>>, vector<32x1xf32>
    %4 = vector.broadcast %3 : vector<32x1xf32> to vector<32x256xf32>
    %5 = vector.broadcast %1 : vector<1x256xf32> to vector<32x256xf32>
    %6 = arith.mulf %4, %5 : vector<32x256xf32>
    %c0_3 = arith.constant 0 : index
    %c0_4 = arith.constant 0 : index
    %7 = vector.load %arg3[%c0_3, %c0_4] : memref<32x1xf32, #tpu.memory_space<vmem>>, vector<32x1xf32>
    %8 = vector.broadcast %7 : vector<32x1xf32> to vector<32x256xf32>
    %9 = vector.broadcast %2 : vector<1x256xf32> to vector<32x256xf32>
    %10 = arith.mulf %8, %9 : vector<32x256xf32>
    %11 = arith.addf %6, %10 : vector<32x256xf32>
    %c0_5 = arith.constant 0 : index
    %c0_6 = arith.constant 0 : index
    %12 = vector.load %arg4[%c0_5, %c0_6] : memref<32x1xf32, #tpu.memory_space<vmem>>, vector<32x1xf32>
    %13 = vector.broadcast %12 : vector<32x1xf32> to vector<32x256xf32>
    %14 = arith.addf %11, %13 : vector<32x256xf32>
    %cst = arith.constant 0.318309873 : f32
    %15 = vector.broadcast %cst : f32 to vector<32x256xf32>
    %16 = arith.mulf %14, %15 : vector<32x256xf32>
    %cst_7 = arith.constant 5.000000e-01 : f32
    %17 = vector.broadcast %cst_7 : f32 to vector<32x256xf32>
    %18 = arith.addf %16, %17 : vector<32x256xf32>
    %19 = math.floor %18 : vector<32x256xf32>
    %cst_8 = arith.constant 3.140625 : f32
    %20 = vector.broadcast %cst_8 : f32 to vector<32x256xf32>
    %21 = arith.mulf %19, %20 : vector<32x256xf32>
    %22 = arith.subf %14, %21 : vector<32x256xf32>
    %cst_9 = arith.constant 9.67025756E-4 : f32
    %23 = vector.broadcast %cst_9 : f32 to vector<32x256xf32>
    %24 = arith.mulf %19, %23 : vector<32x256xf32>
    %25 = arith.subf %22, %24 : vector<32x256xf32>
    %cst_10 = arith.constant 6.27711415E-7 : f32
    %26 = vector.broadcast %cst_10 : f32 to vector<32x256xf32>
    %27 = arith.mulf %19, %26 : vector<32x256xf32>
    %28 = arith.subf %25, %27 : vector<32x256xf32>
    %29 = arith.mulf %28, %28 : vector<32x256xf32>
    %cst_11 = arith.constant -2.50521079E-8 : f32
    %30 = vector.broadcast %cst_11 : f32 to vector<32x256xf32>
    %31 = arith.mulf %30, %29 : vector<32x256xf32>
    %cst_12 = arith.constant 2.75573188E-6 : f32
    %32 = vector.broadcast %cst_12 : f32 to vector<32x256xf32>
    %33 = arith.addf %31, %32 : vector<32x256xf32>
    %34 = arith.mulf %33, %29 : vector<32x256xf32>
    %cst_13 = arith.constant -1.98412701E-4 : f32
    %35 = vector.broadcast %cst_13 : f32 to vector<32x256xf32>
    %36 = arith.addf %34, %35 : vector<32x256xf32>
    %37 = arith.mulf %36, %29 : vector<32x256xf32>
    %cst_14 = arith.constant 0.00833333377 : f32
    %38 = vector.broadcast %cst_14 : f32 to vector<32x256xf32>
    %39 = arith.addf %37, %38 : vector<32x256xf32>
    %40 = arith.mulf %39, %29 : vector<32x256xf32>
    %cst_15 = arith.constant -0.166666672 : f32
    %41 = vector.broadcast %cst_15 : f32 to vector<32x256xf32>
    %42 = arith.addf %40, %41 : vector<32x256xf32>
    %43 = arith.mulf %28, %29 : vector<32x256xf32>
    %44 = arith.mulf %43, %42 : vector<32x256xf32>
    %45 = arith.addf %28, %44 : vector<32x256xf32>
    %cst_16 = arith.constant 5.000000e-01 : f32
    %46 = vector.broadcast %cst_16 : f32 to vector<32x256xf32>
    %47 = arith.mulf %19, %46 : vector<32x256xf32>
    %48 = math.floor %47 : vector<32x256xf32>
    %cst_17 = arith.constant 2.000000e+00 : f32
    %49 = vector.broadcast %cst_17 : f32 to vector<32x256xf32>
    %50 = arith.mulf %49, %48 : vector<32x256xf32>
    %51 = arith.subf %19, %50 : vector<32x256xf32>
    %cst_18 = arith.constant 2.000000e+00 : f32
    %52 = vector.broadcast %cst_18 : f32 to vector<32x256xf32>
    %53 = arith.mulf %52, %51 : vector<32x256xf32>
    %cst_19 = arith.constant 1.000000e+00 : f32
    %54 = vector.broadcast %cst_19 : f32 to vector<32x256xf32>
    %55 = arith.subf %54, %53 : vector<32x256xf32>
    %56 = arith.mulf %55, %45 : vector<32x256xf32>
    %c0_20 = arith.constant 0 : index
    %c0_21 = arith.constant 0 : index
    %57 = vector.load %arg5[%c0_20, %c0_21] : memref<32x32xf32, #tpu.memory_space<vmem>>, vector<32x32xf32>
    %c0_22 = arith.constant 0 : index
    %c0_23 = arith.constant 0 : index
    %58 = vector.load %arg6[%c0_22, %c0_23] : memref<32x1xf32, #tpu.memory_space<vmem>>, vector<32x1xf32>
    %cst_24 = arith.constant dense<0.000000e+00> : vector<32x256xf32>
    %59 = tpu.matmul %57, %56, %cst_24 {dimension_numbers = #tpu.dot_dimension_numbers<[1], [0], [0], [1], [0, 0, 1, 1], [], []>} : vector<32x32xf32>, vector<32x256xf32>, vector<32x256xf32> -> vector<32x256xf32>
    %60 = vector.broadcast %58 : vector<32x1xf32> to vector<32x256xf32>
    %61 = arith.addf %59, %60 : vector<32x256xf32>
    %cst_25 = arith.constant 0.318309873 : f32
    %62 = vector.broadcast %cst_25 : f32 to vector<32x256xf32>
    %63 = arith.mulf %61, %62 : vector<32x256xf32>
    %cst_26 = arith.constant 5.000000e-01 : f32
    %64 = vector.broadcast %cst_26 : f32 to vector<32x256xf32>
    %65 = arith.addf %63, %64 : vector<32x256xf32>
    %66 = math.floor %65 : vector<32x256xf32>
    %cst_27 = arith.constant 3.140625 : f32
    %67 = vector.broadcast %cst_27 : f32 to vector<32x256xf32>
    %68 = arith.mulf %66, %67 : vector<32x256xf32>
    %69 = arith.subf %61, %68 : vector<32x256xf32>
    %cst_28 = arith.constant 9.67025756E-4 : f32
    %70 = vector.broadcast %cst_28 : f32 to vector<32x256xf32>
    %71 = arith.mulf %66, %70 : vector<32x256xf32>
    %72 = arith.subf %69, %71 : vector<32x256xf32>
    %cst_29 = arith.constant 6.27711415E-7 : f32
    %73 = vector.broadcast %cst_29 : f32 to vector<32x256xf32>
    %74 = arith.mulf %66, %73 : vector<32x256xf32>
    %75 = arith.subf %72, %74 : vector<32x256xf32>
    %76 = arith.mulf %75, %75 : vector<32x256xf32>
    %cst_30 = arith.constant -2.50521079E-8 : f32
    %77 = vector.broadcast %cst_30 : f32 to vector<32x256xf32>
    %78 = arith.mulf %77, %76 : vector<32x256xf32>
    %cst_31 = arith.constant 2.75573188E-6 : f32
    %79 = vector.broadcast %cst_31 : f32 to vector<32x256xf32>
    %80 = arith.addf %78, %79 : vector<32x256xf32>
    %81 = arith.mulf %80, %76 : vector<32x256xf32>
    %cst_32 = arith.constant -1.98412701E-4 : f32
    %82 = vector.broadcast %cst_32 : f32 to vector<32x256xf32>
    %83 = arith.addf %81, %82 : vector<32x256xf32>
    %84 = arith.mulf %83, %76 : vector<32x256xf32>
    %cst_33 = arith.constant 0.00833333377 : f32
    %85 = vector.broadcast %cst_33 : f32 to vector<32x256xf32>
    %86 = arith.addf %84, %85 : vector<32x256xf32>
    %87 = arith.mulf %86, %76 : vector<32x256xf32>
    %cst_34 = arith.constant -0.166666672 : f32
    %88 = vector.broadcast %cst_34 : f32 to vector<32x256xf32>
    %89 = arith.addf %87, %88 : vector<32x256xf32>
    %90 = arith.mulf %75, %76 : vector<32x256xf32>
    %91 = arith.mulf %90, %89 : vector<32x256xf32>
    %92 = arith.addf %75, %91 : vector<32x256xf32>
    %cst_35 = arith.constant 5.000000e-01 : f32
    %93 = vector.broadcast %cst_35 : f32 to vector<32x256xf32>
    %94 = arith.mulf %66, %93 : vector<32x256xf32>
    %95 = math.floor %94 : vector<32x256xf32>
    %cst_36 = arith.constant 2.000000e+00 : f32
    %96 = vector.broadcast %cst_36 : f32 to vector<32x256xf32>
    %97 = arith.mulf %96, %95 : vector<32x256xf32>
    %98 = arith.subf %66, %97 : vector<32x256xf32>
    %cst_37 = arith.constant 2.000000e+00 : f32
    %99 = vector.broadcast %cst_37 : f32 to vector<32x256xf32>
    %100 = arith.mulf %99, %98 : vector<32x256xf32>
    %cst_38 = arith.constant 1.000000e+00 : f32
    %101 = vector.broadcast %cst_38 : f32 to vector<32x256xf32>
    %102 = arith.subf %101, %100 : vector<32x256xf32>
    %103 = arith.mulf %102, %92 : vector<32x256xf32>
    %c0_39 = arith.constant 0 : index
    %c0_40 = arith.constant 0 : index
    %104 = vector.load %arg7[%c0_39, %c0_40] : memref<1x32xf32, #tpu.memory_space<vmem>>, vector<1x32xf32>
    %c0_41 = arith.constant 0 : index
    %c0_42 = arith.constant 0 : index
    %105 = vector.load %arg8[%c0_41, %c0_42] : memref<1x1xf32, #tpu.memory_space<vmem>>, vector<1x1xf32>
    %cst_43 = arith.constant dense<0.000000e+00> : vector<1x256xf32>
    %106 = tpu.matmul %104, %103, %cst_43 {dimension_numbers = #tpu.dot_dimension_numbers<[1], [0], [0], [1], [0, 0, 1, 1], [], []>} : vector<1x32xf32>, vector<32x256xf32>, vector<1x256xf32> -> vector<1x256xf32>
    %107 = vector.broadcast %105 : vector<1x1xf32> to vector<1x256xf32>
    %108 = arith.addf %106, %107 : vector<1x256xf32>
    %c0_44 = arith.constant 0 : index
    %c0_45 = arith.constant 0 : index
    %109 = vector.load %arg9[%c0_44, %c0_45] : memref<1x256xf32, #tpu.memory_space<vmem>>, vector<1x256xf32>
    tpu.vector_store %arg9[%c0_44, %c0_45], %108 {strides = array<i32>} : memref<1x256xf32, #tpu.memory_space<vmem>>, vector<1x256xf32>,
    return
  }
  func.func @transform_0(%arg0: i32) -> (i32, i32) {
    %c0_i32 = arith.constant 0 : i32
    %c0_i32_0 = arith.constant 0 : i32
    return %c0_i32, %arg0 : i32, i32
  }
  func.func @transform_1(%arg0: i32) -> (i32, i32) {
    %c0_i32 = arith.constant 0 : i32
    %c0_i32_0 = arith.constant 0 : i32
    %c0_i32_1 = arith.constant 0 : i32
    return %c0_i32, %c0_i32_0 : i32, i32
  }
  func.func @transform_2(%arg0: i32) -> (i32, i32) {
    %c0_i32 = arith.constant 0 : i32
    %c0_i32_0 = arith.constant 0 : i32
    %c0_i32_1 = arith.constant 0 : i32
    return %c0_i32, %c0_i32_0 : i32, i32
  }
  func.func @transform_3(%arg0: i32) -> (i32, i32) {
    %c0_i32 = arith.constant 0 : i32
    %c0_i32_0 = arith.constant 0 : i32
    %c0_i32_1 = arith.constant 0 : i32
    return %c0_i32, %c0_i32_0 : i32, i32
  }
  func.func @transform_4(%arg0: i32) -> (i32, i32) {
    %c0_i32 = arith.constant 0 : i32
    %c0_i32_0 = arith.constant 0 : i32
    %c0_i32_1 = arith.constant 0 : i32
    return %c0_i32, %c0_i32_0 : i32, i32
  }
  func.func @transform_5(%arg0: i32) -> (i32, i32) {
    %c0_i32 = arith.constant 0 : i32
    %c0_i32_0 = arith.constant 0 : i32
    %c0_i32_1 = arith.constant 0 : i32
    return %c0_i32, %c0_i32_0 : i32, i32
  }
  func.func @transform_6(%arg0: i32) -> (i32, i32) {
    %c0_i32 = arith.constant 0 : i32
    %c0_i32_0 = arith.constant 0 : i32
    %c0_i32_1 = arith.constant 0 : i32
    return %c0_i32, %c0_i32_0 : i32, i32
  }
  func.func @transform_7(%arg0: i32) -> (i32, i32) {
    %c0_i32 = arith.constant 0 : i32
    %c0_i32_0 = arith.constant 0 : i32
    %c0_i32_1 = arith.constant 0 : i32
    return %c0_i32, %c0_i32_0 : i32, i32
  }
  func.func @transform_8(%arg0: i32) -> (i32, i32) {
    %c0_i32 = arith.constant 0 : i32
    %c0_i32_0 = arith.constant 0 : i32
    return %c0_i32, %arg0 : i32, i32
  }
}

</mosaic_0001>

<llo_original>
// kernel: tpu_custom_call.1
$region0: #{tpu_custom_call.1}
  #allocation0 [shape = 'u32[]', space=smem, size = 0x4, offset = 0x4, fixed_abs, tag = 'smem constant byte address 0x4 - core index']
  #allocation1 [shape = 'u32[144,128]{1,0:T(1,128)}', space=vmem, size = 0x12000, scoped, tag = 'internal scratch']
  #allocation2 [shape = 'f32[1,1]{1,0:T(1,128)S(1)}', space=vmem, size = 0x200, scoped, tag = 'scoped memory for tpu_custom_call.1']
  %s0 = inlined_call_operand.vmem [shape: f32[2,1024], index: 0, kind: input, shape index: {}]
  %s1 = inlined_call_operand.vmem [shape: f32[32,1], index: 1, kind: input, shape index: {}]
  %s2 = inlined_call_operand.vmem [shape: f32[32,1], index: 2, kind: input, shape index: {}]
  %s3 = inlined_call_operand.vmem [shape: f32[32,1], index: 3, kind: input, shape index: {}]
  %s4 = inlined_call_operand.vmem [shape: f32[32,32], index: 4, kind: input, shape index: {}]
  %s5 = inlined_call_operand.vmem [shape: f32[32,1], index: 5, kind: input, shape index: {}]
  %s6 = inlined_call_operand.vmem [shape: f32[1,32], index: 6, kind: input, shape index: {}]
  %s7 = inlined_call_operand.<no memory space> [shape: f32[1,1], index: 7, kind: input, shape index: {}]
  %s8 = inlined_call_operand.hbm [shape: f32[1,1024], index: 8, kind: output, shape index: {}]
  %s9 = sld [smem:[#allocation0]]
  $region65: #{tpu_custom_call.1} parent=0
    _
  %s11 = ssub.s32 1, %s9
  %s12 = scalar_select 0, %s11, %s9
  %v13 = vstv %s7
  %14 = vst [vmem:[#allocation2] sm:$0x1] %v13
  $region1: #{tpu_custom_call.1} parent=0
    #allocation3 [shape = 'u8[2048]{0}', space=vmem, size = 0x800, scoped, tag = 'output window, operand 0']
    #allocation4 [shape = 's32[2]{0}', space=sflag, size = 0x8, scoped, tag = 'scoped memory for tpu_custom_call.1']
    %15 = vsyncpa [#allocation4], 0
    %s16 = scalar_lea.sflag [#allocation4], 1
    %17 = vsyncpa %s16, 0
    loop: start=0, step=1, limit=6
    $region2: #{tpu_custom_call.1} parent=1 // loop_pre_header
      _
    $region3: #{tpu_custom_call.1} parent=1 // loop_header
      %s19 = sphi 0, %s23
      %p20 = scmp.ge.s32.totalorder %s19, 6
      %s29 = sphi 0, %s31
      %s32 = sphi 0, %s29
      %s33 = sphi 0, %s32
      %s49 = sphi 0, %s33
      %s53 = sphi 0, %s53
      %s55 = sphi 0, %s53
      %s56 = sphi 0, %s55
      %s70 = sphi 0, %s56
      %s74 = sphi 0, %s74
      %s76 = sphi 0, %s74
      %s77 = sphi 0, %s76
      %s91 = sphi 0, %s77
      %s95 = sphi 0, %s95
      %s97 = sphi 0, %s95
      %s98 = sphi 0, %s97
      %s112 = sphi 0, %s98
      %s116 = sphi 0, %s116
      %s118 = sphi 0, %s116
      %s119 = sphi 0, %s118
      %s133 = sphi 0, %s119
      %s137 = sphi 0, %s137
      %s139 = sphi 0, %s137
      %s140 = sphi 0, %s139
      %s154 = sphi 0, %s140
      %s158 = sphi 0, %s158
      %s160 = sphi 0, %s158
      %s161 = sphi 0, %s160
      %s175 = sphi 0, %s161
      %s179 = sphi 0, %s179
      %s181 = sphi 0, %s179
      %s182 = sphi 0, %s181
      %s196 = sphi 0, %s182
      %s202 = sphi 0, %s204
      %s205 = sphi 0, %s202
      %s206 = sphi 0, %s205
      %s222 = sphi 0, %s206
    $region4: #{tpu_custom_call.1} parent=1 // loop_header_branch
      %22 = sbr.rel (%p20) target = $region8
    $region5: #{tpu_custom_call.1} parent=1 // loop_body
      %s24 = ssub.s32 %s19, 1
      %s25 = ssub.s32 %s19, 2
      %s26 = sadd.s32 %s19, 1
      %s27 = ssub.s32 %s19, %s26
      %p28 = scmp.eq.s32.totalorder %s27, 0
      %s30 = sadd.s32 %s29, 1
      %s31 = scalar_select %p28, %s29, %s30
      %p34 = pneg %p28
      %p35 = scmp.eq.s32.totalorder %s19, 3
      %p36 = por %p34, %p35
      %p37 = scmp.ne.s32.totalorder %s29, %s32
      %p38 = scmp.eq.s32.totalorder %s19, 0
      %p39 = por %p37, %p38
      %p40 = scmp.ne.s32.totalorder %s29, %s32
      %p41 = scmp.eq.s32.totalorder %s24, 3
      %p42 = por %p40, %p41
      %p43 = scmp.ne.s32.totalorder %s32, %s33
      %p44 = scmp.eq.s32.totalorder %s24, 0
      %p45 = por %p43, %p44
      %p46 = scmp.ne.s32.totalorder %s32, %s33
      %p47 = scmp.eq.s32.totalorder %s25, 3
      %p48 = por %p46, %p47
      %p50 = scmp.ne.s32.totalorder %s33, %s49
      %p51 = scmp.eq.s32.totalorder %s25, 0
      %p52 = por %p50, %p51
      %s54 = sadd.s32 %s53, 1
      %p57 = scmp.eq.s32.totalorder %s19, 3
      %p58 = scmp.ne.s32.totalorder %s53, %s55
      %p59 = scmp.eq.s32.totalorder %s19, 0
      %p60 = por %p58, %p59
      %p61 = scmp.ne.s32.totalorder %s53, %s55
      %p62 = scmp.eq.s32.totalorder %s24, 3
      %p63 = por %p61, %p62
      %p64 = scmp.ne.s32.totalorder %s55, %s56
      %p65 = scmp.eq.s32.totalorder %s24, 0
      %p66 = por %p64, %p65
      %p67 = scmp.ne.s32.totalorder %s55, %s56
      %p68 = scmp.eq.s32.totalorder %s25, 3
      %p69 = por %p67, %p68
      %p71 = scmp.ne.s32.totalorder %s56, %s70
      %p72 = scmp.eq.s32.totalorder %s25, 0
      %p73 = por %p71, %p72
      %s75 = sadd.s32 %s74, 1
      %p78 = scmp.eq.s32.totalorder %s19, 3
      %p79 = scmp.ne.s32.totalorder %s74, %s76
      %p80 = scmp.eq.s32.totalorder %s19, 0
      %p81 = por %p79, %p80
      %p82 = scmp.ne.s32.totalorder %s74, %s76
      %p83 = scmp.eq.s32.totalorder %s24, 3
      %p84 = por %p82, %p83
      %p85 = scmp.ne.s32.totalorder %s76, %s77
      %p86 = scmp.eq.s32.totalorder %s24, 0
      %p87 = por %p85, %p86
      %p88 = scmp.ne.s32.totalorder %s76, %s77
      %p89 = scmp.eq.s32.totalorder %s25, 3
      %p90 = por %p88, %p89
      %p92 = scmp.ne.s32.totalorder %s77, %s91
      %p93 = scmp.eq.s32.totalorder %s25, 0
      %p94 = por %p92, %p93
      %s96 = sadd.s32 %s95, 1
      %p99 = scmp.eq.s32.totalorder %s19, 3
      %p100 = scmp.ne.s32.totalorder %s95, %s97
      %p101 = scmp.eq.s32.totalorder %s19, 0
      %p102 = por %p100, %p101
      %p103 = scmp.ne.s32.totalorder %s95, %s97
      %p104 = scmp.eq.s32.totalorder %s24, 3
      %p105 = por %p103, %p104
      %p106 = scmp.ne.s32.totalorder %s97, %s98
      %p107 = scmp.eq.s32.totalorder %s24, 0
      %p108 = por %p106, %p107
      %p109 = scmp.ne.s32.totalorder %s97, %s98
      %p110 = scmp.eq.s32.totalorder %s25, 3
      %p111 = por %p109, %p110
      %p113 = scmp.ne.s32.totalorder %s98, %s112
      %p114 = scmp.eq.s32.totalorder %s25, 0
      %p115 = por %p113, %p114
      %s117 = sadd.s32 %s116, 1
      %p120 = scmp.eq.s32.totalorder %s19, 3
      %p121 = scmp.ne.s32.totalorder %s116, %s118
      %p122 = scmp.eq.s32.totalorder %s19, 0
      %p123 = por %p121, %p122
      %p124 = scmp.ne.s32.totalorder %s116, %s118
      %p125 = scmp.eq.s32.totalorder %s24, 3
      %p126 = por %p124, %p125
      %p127 = scmp.ne.s32.totalorder %s118, %s119
      %p128 = scmp.eq.s32.totalorder %s24, 0
      %p129 = por %p127, %p128
      %p130 = scmp.ne.s32.totalorder %s118, %s119
      %p131 = scmp.eq.s32.totalorder %s25, 3
      %p132 = por %p130, %p131
      %p134 = scmp.ne.s32.totalorder %s119, %s133
      %p135 = scmp.eq.s32.totalorder %s25, 0
      %p136 = por %p134, %p135
      %s138 = sadd.s32 %s137, 1
      %p141 = scmp.eq.s32.totalorder %s19, 3
      %p142 = scmp.ne.s32.totalorder %s137, %s139
      %p143 = scmp.eq.s32.totalorder %s19, 0
      %p144 = por %p142, %p143
      %p145 = scmp.ne.s32.totalorder %s137, %s139
      %p146 = scmp.eq.s32.totalorder %s24, 3
      %p147 = por %p145, %p146
      %p148 = scmp.ne.s32.totalorder %s139, %s140
      %p149 = scmp.eq.s32.totalorder %s24, 0
      %p150 = por %p148, %p149
      %p151 = scmp.ne.s32.totalorder %s139, %s140
      %p152 = scmp.eq.s32.totalorder %s25, 3
      %p153 = por %p151, %p152
      %p155 = scmp.ne.s32.totalorder %s140, %s154
      %p156 = scmp.eq.s32.totalorder %s25, 0
      %p157 = por %p155, %p156
      %s159 = sadd.s32 %s158, 1
      %p162 = scmp.eq.s32.totalorder %s19, 3
      %p163 = scmp.ne.s32.totalorder %s158, %s160
      %p164 = scmp.eq.s32.totalorder %s19, 0
      %p165 = por %p163, %p164
      %p166 = scmp.ne.s32.totalorder %s158, %s160
      %p167 = scmp.eq.s32.totalorder %s24, 3
      %p168 = por %p166, %p167
      %p169 = scmp.ne.s32.totalorder %s160, %s161
      %p170 = scmp.eq.s32.totalorder %s24, 0
      %p171 = por %p169, %p170
      %p172 = scmp.ne.s32.totalorder %s160, %s161
      %p173 = scmp.eq.s32.totalorder %s25, 3
      %p174 = por %p172, %p173
      %p176 = scmp.ne.s32.totalorder %s161, %s175
      %p177 = scmp.eq.s32.totalorder %s25, 0
      %p178 = por %p176, %p177
      %s180 = sadd.s32 %s179, 1
      %p183 = scmp.eq.s32.totalorder %s19, 3
      %p184 = scmp.ne.s32.totalorder %s179, %s181
      %p185 = scmp.eq.s32.totalorder %s19, 0
      %p186 = por %p184, %p185
      %p187 = scmp.ne.s32.totalorder %s179, %s181
      %p188 = scmp.eq.s32.totalorder %s24, 3
      %p189 = por %p187, %p188
      %p190 = scmp.ne.s32.totalorder %s181, %s182
      %p191 = scmp.eq.s32.totalorder %s24, 0
      %p192 = por %p190, %p191
      %p193 = scmp.ne.s32.totalorder %s181, %s182
      %p194 = scmp.eq.s32.totalorder %s25, 3
      %p195 = por %p193, %p194
      %p197 = scmp.ne.s32.totalorder %s182, %s196
      %p198 = scmp.eq.s32.totalorder %s25, 0
      %p199 = por %p197, %p198
      %s200 = ssub.s32 %s19, %s26
      %p201 = scmp.eq.s32.totalorder %s200, 0
      %s203 = sadd.s32 %s202, 1
      %s204 = scalar_select %p201, %s202, %s203
      %p207 = pneg %p201
      %p208 = scmp.eq.s32.totalorder %s19, 3
      %p209 = por %p207, %p208
      %p210 = scmp.ne.s32.totalorder %s202, %s205
      %p211 = scmp.eq.s32.totalorder %s19, 0
      %p212 = por %p210, %p211
      %p213 = scmp.ne.s32.totalorder %s202, %s205
      %p214 = scmp.eq.s32.totalorder %s24, 3
      %p215 = por %p213, %p214
      %p216 = scmp.ne.s32.totalorder %s205, %s206
      %p217 = scmp.eq.s32.totalorder %s24, 0
      %p218 = por %p216, %p217
      %p219 = scmp.ne.s32.totalorder %s205, %s206
      %p220 = scmp.eq.s32.totalorder %s25, 3
      %p221 = por %p219, %p220
      %p223 = scmp.ne.s32.totalorder %s206, %s222
      %p224 = scmp.eq.s32.totalorder %s25, 0
      %p225 = por %p223, %p224
      %p226 = scmp.le.s32.totalorder 1, %s19
      %p227 = scmp.lt.s32.totalorder %s19, 5
      %p228 = pnand %p226, %p227
      %p229 = pneg %p228
      // Predicated region
      $region9: #{tpu_custom_call.1} parent=5 // pred_check
        _
      $region10: #{tpu_custom_call.1} parent=5 // pred_check_branch
        %231 = sbr.rel (%p228) target = $region12
      $region11: #{tpu_custom_call.1} parent=5 // pred_region
        %s232 = ssub.s32 %s19, 1
        // Predicated region
        $region13: #{tpu_custom_call.1} parent=11 // pred_check
          %p233 = pneg %p66
        $region14: #{tpu_custom_call.1} parent=11 // pred_check_branch
          %235 = sbr.rel (%p233) target = $region16
        $region15: #{tpu_custom_call.1} parent=11 // pred_region
          _
        $region16: #{tpu_custom_call.1} parent=11 // pred_fallthru
          _
        // Predicated region
        $region17: #{tpu_custom_call.1} parent=11 // pred_check
          %p236 = pneg %p87
        $region18: #{tpu_custom_call.1} parent=11 // pred_check_branch
          %238 = sbr.rel (%p236) target = $region20
        $region19: #{tpu_custom_call.1} parent=11 // pred_region
          _
        $region20: #{tpu_custom_call.1} parent=11 // pred_fallthru
          _
        // Predicated region
        $region21: #{tpu_custom_call.1} parent=11 // pred_check
          %p239 = pneg %p108
        $region22: #{tpu_custom_call.1} parent=11 // pred_check_branch
          %241 = sbr.rel (%p239) target = $region24
        $region23: #{tpu_custom_call.1} parent=11 // pred_region
          _
        $region24: #{tpu_custom_call.1} parent=11 // pred_fallthru
          _
        // Predicated region
        $region25: #{tpu_custom_call.1} parent=11 // pred_check
          %p242 = pneg %p129
        $region26: #{tpu_custom_call.1} parent=11 // pred_check_branch
          %244 = sbr.rel (%p242) target = $region28
        $region27: #{tpu_custom_call.1} parent=11 // pred_region
          _
        $region28: #{tpu_custom_call.1} parent=11 // pred_fallthru
          _
        // Predicated region
        $region29: #{tpu_custom_call.1} parent=11 // pred_check
          %p245 = pneg %p150
        $region30: #{tpu_custom_call.1} parent=11 // pred_check_branch
          %247 = sbr.rel (%p245) target = $region32
        $region31: #{tpu_custom_call.1} parent=11 // pred_region
          _
        $region32: #{tpu_custom_call.1} parent=11 // pred_fallthru
          _
        // Predicated region
        $region33: #{tpu_custom_call.1} parent=11 // pred_check
          %p248 = pneg %p171
        $region34: #{tpu_custom_call.1} parent=11 // pred_check_branch
          %250 = sbr.rel (%p248) target = $region36
        $region35: #{tpu_custom_call.1} parent=11 // pred_region
          _
        $region36: #{tpu_custom_call.1} parent=11 // pred_fallthru
          _
        // Predicated region
        $region37: #{tpu_custom_call.1} parent=11 // pred_check
          %p251 = pneg %p192
        $region38: #{tpu_custom_call.1} parent=11 // pred_check_branch
          %253 = sbr.rel (%p251) target = $region40
        $region39: #{tpu_custom_call.1} parent=11 // pred_region
          _
        $region40: #{tpu_custom_call.1} parent=11 // pred_fallthru
          _
      $region12: #{tpu_custom_call.1} parent=5 // pred_fallthru
        _
      %p254 = scmp.lt.s32.totalorder %s19, 4
      // Predicated region
      $region41: #{tpu_custom_call.1} parent=5 // pred_check
        %p255 = pneg %p254
      $region42: #{tpu_custom_call.1} parent=5 // pred_check_branch
        %257 = sbr.rel (%p255) target = $region44
      $region43: #{tpu_custom_call.1} parent=5 // pred_region
        // Predicated region
        $region45: #{tpu_custom_call.1} parent=43 // pred_check
          %p258 = pneg %p39
        $region46: #{tpu_custom_call.1} parent=43 // pred_check_branch
          %260 = sbr.rel (%p258) target = $region48
        $region47: #{tpu_custom_call.1} parent=43 // pred_region
          %s261 = smul.u32 2, %s19
          %p262 = scmp.lt.s32.totalorder %s261, 7
          %s263 = scalar_select %p262, %s261, 7
          %s264 = smul.addr %s263, 2
          %s265 = scalar_lea.vmem %s0, %s264
          %s266 = smul.u32 2, %s19
        $region48: #{tpu_custom_call.1} parent=43 // pred_fallthru
          _
      $region44: #{tpu_custom_call.1} parent=5 // pred_fallthru
        _
      %p267 = scmp.le.s32.totalorder 1, %s19
      %p268 = scmp.lt.s32.totalorder %s19, 5
      %p269 = pnand %p267, %p268
      %p270 = pneg %p269
      // Predicated region
      $region49: #{tpu_custom_call.1} parent=5 // pred_check
        _
      $region50: #{tpu_custom_call.1} parent=5 // pred_check_branch
        %272 = sbr.rel (%p269) target = $region52
      $region51: #{tpu_custom_call.1} parent=5 // pred_region
        %s273 = ssub.s32 %s19, 1
        %s274 = smul.u32 2, %s24
        %p275 = scmp.lt.s32.totalorder %s274, 7
        %s276 = scalar_select %p275, %s274, 7
        %s277 = smul.addr %s276, 2
        %s278 = scalar_lea.vmem %s0, %s277
        %p279 = pneg %p45
        %p280 = pneg %p42
        %p281 = pneg %p66
        %p282 = pneg %p63
        %p283 = pneg %p87
        %p284 = pneg %p84
        %p285 = pneg %p108
        %p286 = pneg %p105
        %p287 = pneg %p129
        %p288 = pneg %p126
        %p289 = pneg %p150
        %p290 = pneg %p147
        %p291 = pneg %p171
        %p292 = pneg %p168
        %p293 = pneg %p192
        %p294 = pneg %p189
        %p295 = pneg %p218
        %p296 = pneg %p215
        %s297 = sand.u32 %s205, 1
        %s298 = scalar_lea.sflag [#allocation4], %s297
        %s299 = sand.u32 %s205, 1
        %s300 = smul.addr %s299, 2
        %s301 = scalar_lea.vmem [#allocation3], %s300
        %s302 = smul.u32 2, %s24
        %p303 = scmp.lt.s32.totalorder %s302, 7
        %s304 = scalar_select %p303, %s302, 7
        %s305 = smul.addr %s304, 2
        %s306 = scalar_lea.vmem %s0, %s305
        %s307 = smul.u32 2, %s24
        %s308 = smul.u32 2, %s24
        %v309 = vld [vmem:[%s306] sm:$0xf]
        %v310 = vld [vmem:[%s1] sm:$0xff]
        %v311 = vld [vmem:[%s1 + $0x8] sm:$0xff]
        %v312 = vld [vmem:[%s1 + $0x10] sm:$0xff]
        %v313 = vld [vmem:[%s1 + $0x18] sm:$0xff]
        %315 = vset.pattern.permute.xlu0 0
        %316 = vperm.xlu0 %315, %v310
        %v317 = vpop.permute.xlu0 %316
        %320 = vset.pattern.permute.xlu0 0
        %321 = vperm.xlu0 %320, %v311
        %v322 = vpop.permute.xlu0 %321
        %325 = vset.pattern.permute.xlu0 0
        %326 = vperm.xlu0 %325, %v312
        %v327 = vpop.permute.xlu0 %326
        %330 = vset.pattern.permute.xlu0 0
        %331 = vperm.xlu0 %330, %v313
        %v332 = vpop.permute.xlu0 %331
        %v335 = vlaneseq
        %v336 = vshrl.u32 %v335, 7
        %v337 = vsub.s32 0, %v336
        %v338 = vrot.slane %v309, %v337
        %v339 = vlaneseq
        %v340 = vshrl.u32 %v339, 7
        %v341 = vsub.s32 2, %v340
        %v342 = vrot.slane %v309, %v341
        %v345 = vlaneseq
        %v346 = vshrl.u32 %v345, 7
        %v347 = vsub.s32 0, %v346
        %v348 = vrot.slane %v338, %v347
        %v349 = vlaneseq
        %v350 = vshrl.u32 %v349, 7
        %v351 = vsub.s32 0, %v350
        %v352 = vrot.slane %v342, %v351
        %v353 = vmul.f32 %v317, %v348
        %v354 = vmul.f32 %v317, %v352
        %v355 = vmul.f32 %v322, %v348
        %v356 = vmul.f32 %v322, %v352
        %v357 = vmul.f32 %v327, %v348
        %v358 = vmul.f32 %v327, %v352
        %v359 = vmul.f32 %v332, %v348
        %v360 = vmul.f32 %v332, %v352
        %v361 = vld [vmem:[%s2] sm:$0xff]
        %v362 = vld [vmem:[%s2 + $0x8] sm:$0xff]
        %v363 = vld [vmem:[%s2 + $0x10] sm:$0xff]
        %v364 = vld [vmem:[%s2 + $0x18] sm:$0xff]
        %366 = vset.pattern.permute.xlu0 0
        %367 = vperm.xlu0 %366, %v361
        %v368 = vpop.permute.xlu0 %367
        %371 = vset.pattern.permute.xlu0 0
        %372 = vperm.xlu0 %371, %v362
        %v373 = vpop.permute.xlu0 %372
        %376 = vset.pattern.permute.xlu0 0
        %377 = vperm.xlu0 %376, %v363
        %v378 = vpop.permute.xlu0 %377
        %381 = vset.pattern.permute.xlu0 0
        %382 = vperm.xlu0 %381, %v364
        %v383 = vpop.permute.xlu0 %382
        %v385 = vlaneseq
        %v386 = vshrl.u32 %v385, 7
        %v387 = vsub.s32 1, %v386
        %v388 = vrot.slane %v309, %v387
        %v389 = vlaneseq
        %v390 = vshrl.u32 %v389, 7
        %v391 = vsub.s32 3, %v390
        %v392 = vrot.slane %v309, %v391
        %v395 = vlaneseq
        %v396 = vshrl.u32 %v395, 7
        %v397 = vsub.s32 1, %v396
        %v398 = vrot.slane %v388, %v397
        %v399 = vlaneseq
        %v400 = vshrl.u32 %v399, 7
        %v401 = vsub.s32 1, %v400
        %v402 = vrot.slane %v392, %v401
        %v403 = vmul.f32 %v368, %v398
        %v404 = vmul.f32 %v368, %v402
        %v405 = vmul.f32 %v373, %v398
        %v406 = vmul.f32 %v373, %v402
        %v407 = vmul.f32 %v378, %v398
        %v408 = vmul.f32 %v378, %v402
        %v409 = vmul.f32 %v383, %v398
        %v410 = vmul.f32 %v383, %v402
        %v411 = vadd.f32 %v353, %v403
        %v412 = vadd.f32 %v354, %v404
        %v413 = vadd.f32 %v355, %v405
        %v414 = vadd.f32 %v356, %v406
        %v415 = vadd.f32 %v357, %v407
        %v416 = vadd.f32 %v358, %v408
        %v417 = vadd.f32 %v359, %v409
        %v418 = vadd.f32 %v360, %v410
        %v419 = vld [vmem:[%s3] sm:$0xff]
        %v420 = vld [vmem:[%s3 + $0x8] sm:$0xff]
        %v421 = vld [vmem:[%s3 + $0x10] sm:$0xff]
        %v422 = vld [vmem:[%s3 + $0x18] sm:$0xff]
        %424 = vset.pattern.permute.xlu0 0
        %425 = vperm.xlu0 %424, %v419
        %v426 = vpop.permute.xlu0 %425
        %429 = vset.pattern.permute.xlu0 0
        %430 = vperm.xlu0 %429, %v420
        %v431 = vpop.permute.xlu0 %430
        %434 = vset.pattern.permute.xlu0 0
        %435 = vperm.xlu0 %434, %v421
        %v436 = vpop.permute.xlu0 %435
        %439 = vset.pattern.permute.xlu0 0
        %440 = vperm.xlu0 %439, %v422
        %v441 = vpop.permute.xlu0 %440
        %v443 = vadd.f32 %v411, %v426
        %v444 = vadd.f32 %v412, %v426
        %v445 = vadd.f32 %v413, %v431
        %v446 = vadd.f32 %v414, %v431
        %v447 = vadd.f32 %v415, %v436
        %v448 = vadd.f32 %v416, %v436
        %v449 = vadd.f32 %v417, %v441
        %v450 = vadd.f32 %v418, %v441
        %v451 = vmul.f32 %v443, 0.31830987
        %v452 = vmul.f32 %v444, 0.31830987
        %v453 = vmul.f32 %v445, 0.31830987
        %v454 = vmul.f32 %v446, 0.31830987
        %v455 = vmul.f32 %v447, 0.31830987
        %v456 = vmul.f32 %v448, 0.31830987
        %v457 = vmul.f32 %v449, 0.31830987
        %v458 = vmul.f32 %v450, 0.31830987
        %v459 = vadd.f32 %v451, 0.5
        %v460 = vadd.f32 %v452, 0.5
        %v461 = vadd.f32 %v453, 0.5
        %v462 = vadd.f32 %v454, 0.5
        %v463 = vadd.f32 %v455, 0.5
        %v464 = vadd.f32 %v456, 0.5
        %v465 = vadd.f32 %v457, 0.5
        %v466 = vadd.f32 %v458, 0.5
        %v467 = vfloor.f32 %v459
        %v468 = vfloor.f32 %v460
        %v469 = vfloor.f32 %v461
        %v470 = vfloor.f32 %v462
        %v471 = vfloor.f32 %v463
        %v472 = vfloor.f32 %v464
        %v473 = vfloor.f32 %v465
        %v474 = vfloor.f32 %v466
        %v475 = vmul.f32 %v467, 3.140625
        %v476 = vmul.f32 %v468, 3.140625
        %v477 = vmul.f32 %v469, 3.140625
        %v478 = vmul.f32 %v470, 3.140625
        %v479 = vmul.f32 %v471, 3.140625
        %v480 = vmul.f32 %v472, 3.140625
        %v481 = vmul.f32 %v473, 3.140625
        %v482 = vmul.f32 %v474, 3.140625
        %v483 = vsub.f32 %v443, %v475
        %v484 = vsub.f32 %v444, %v476
        %v485 = vsub.f32 %v445, %v477
        %v486 = vsub.f32 %v446, %v478
        %v487 = vsub.f32 %v447, %v479
        %v488 = vsub.f32 %v448, %v480
        %v489 = vsub.f32 %v449, %v481
        %v490 = vsub.f32 %v450, %v482
        %v491 = vmul.f32 %v467, 0.00096702576
        %v492 = vmul.f32 %v468, 0.00096702576
        %v493 = vmul.f32 %v469, 0.00096702576
        %v494 = vmul.f32 %v470, 0.00096702576
        %v495 = vmul.f32 %v471, 0.00096702576
        %v496 = vmul.f32 %v472, 0.00096702576
        %v497 = vmul.f32 %v473, 0.00096702576
        %v498 = vmul.f32 %v474, 0.00096702576
        %v499 = vsub.f32 %v483, %v491
        %v500 = vsub.f32 %v484, %v492
        %v501 = vsub.f32 %v485, %v493
        %v502 = vsub.f32 %v486, %v494
        %v503 = vsub.f32 %v487, %v495
        %v504 = vsub.f32 %v488, %v496
        %v505 = vsub.f32 %v489, %v497
        %v506 = vsub.f32 %v490, %v498
        %v507 = vmul.f32 %v467, 6.277114e-07
        %v508 = vmul.f32 %v468, 6.277114e-07
        %v509 = vmul.f32 %v469, 6.277114e-07
        %v510 = vmul.f32 %v470, 6.277114e-07
        %v511 = vmul.f32 %v471, 6.277114e-07
        %v512 = vmul.f32 %v472, 6.277114e-07
        %v513 = vmul.f32 %v473, 6.277114e-07
        %v514 = vmul.f32 %v474, 6.277114e-07
        %v515 = vsub.f32 %v499, %v507
        %v516 = vsub.f32 %v500, %v508
        %v517 = vsub.f32 %v501, %v509
        %v518 = vsub.f32 %v502, %v510
        %v519 = vsub.f32 %v503, %v511
        %v520 = vsub.f32 %v504, %v512
        %v521 = vsub.f32 %v505, %v513
        %v522 = vsub.f32 %v506, %v514
        %v523 = vmul.f32 %v515, %v515
        %v524 = vmul.f32 %v516, %v516
        %v525 = vmul.f32 %v517, %v517
        %v526 = vmul.f32 %v518, %v518
        %v527 = vmul.f32 %v519, %v519
        %v528 = vmul.f32 %v520, %v520
        %v529 = vmul.f32 %v521, %v521
        %v530 = vmul.f32 %v522, %v522
        %v531 = vmul.f32 %v523, -2.5052108e-08
        %v532 = vmul.f32 %v524, -2.5052108e-08
        %v533 = vmul.f32 %v525, -2.5052108e-08
        %v534 = vmul.f32 %v526, -2.5052108e-08
        %v535 = vmul.f32 %v527, -2.5052108e-08
        %v536 = vmul.f32 %v528, -2.5052108e-08
        %v537 = vmul.f32 %v529, -2.5052108e-08
        %v538 = vmul.f32 %v530, -2.5052108e-08
        %v539 = vadd.f32 %v531, 2.7557319e-06
        %v540 = vadd.f32 %v532, 2.7557319e-06
        %v541 = vadd.f32 %v533, 2.7557319e-06
        %v542 = vadd.f32 %v534, 2.7557319e-06
        %v543 = vadd.f32 %v535, 2.7557319e-06
        %v544 = vadd.f32 %v536, 2.7557319e-06
        %v545 = vadd.f32 %v537, 2.7557319e-06
        %v546 = vadd.f32 %v538, 2.7557319e-06
        %v547 = vmul.f32 %v539, %v523
        %v548 = vmul.f32 %v540, %v524
        %v549 = vmul.f32 %v541, %v525
        %v550 = vmul.f32 %v542, %v526
        %v551 = vmul.f32 %v543, %v527
        %v552 = vmul.f32 %v544, %v528
        %v553 = vmul.f32 %v545, %v529
        %v554 = vmul.f32 %v546, %v530
        %v555 = vadd.f32 %v547, -0.0001984127
        %v556 = vadd.f32 %v548, -0.0001984127
        %v557 = vadd.f32 %v549, -0.0001984127
        %v558 = vadd.f32 %v550, -0.0001984127
        %v559 = vadd.f32 %v551, -0.0001984127
        %v560 = vadd.f32 %v552, -0.0001984127
        %v561 = vadd.f32 %v553, -0.0001984127
        %v562 = vadd.f32 %v554, -0.0001984127
        %v563 = vmul.f32 %v555, %v523
        %v564 = vmul.f32 %v556, %v524
        %v565 = vmul.f32 %v557, %v525
        %v566 = vmul.f32 %v558, %v526
        %v567 = vmul.f32 %v559, %v527
        %v568 = vmul.f32 %v560, %v528
        %v569 = vmul.f32 %v561, %v529
        %v570 = vmul.f32 %v562, %v530
        %v571 = vadd.f32 %v563, 0.008333334
        %v572 = vadd.f32 %v564, 0.008333334
        %v573 = vadd.f32 %v565, 0.008333334
        %v574 = vadd.f32 %v566, 0.008333334
        %v575 = vadd.f32 %v567, 0.008333334
        %v576 = vadd.f32 %v568, 0.008333334
        %v577 = vadd.f32 %v569, 0.008333334
        %v578 = vadd.f32 %v570, 0.008333334
        %v579 = vmul.f32 %v571, %v523
        %v580 = vmul.f32 %v572, %v524
        %v581 = vmul.f32 %v573, %v525
        %v582 = vmul.f32 %v574, %v526
        %v583 = vmul.f32 %v575, %v527
        %v584 = vmul.f32 %v576, %v528
        %v585 = vmul.f32 %v577, %v529
        %v586 = vmul.f32 %v578, %v530
        %v587 = vadd.f32 %v579, -0.16666667
        %v588 = vadd.f32 %v580, -0.16666667
        %v589 = vadd.f32 %v581, -0.16666667
        %v590 = vadd.f32 %v582, -0.16666667
        %v591 = vadd.f32 %v583, -0.16666667
        %v592 = vadd.f32 %v584, -0.16666667
        %v593 = vadd.f32 %v585, -0.16666667
        %v594 = vadd.f32 %v586, -0.16666667
        %v595 = vmul.f32 %v515, %v523
        %v596 = vmul.f32 %v516, %v524
        %v597 = vmul.f32 %v517, %v525
        %v598 = vmul.f32 %v518, %v526
        %v599 = vmul.f32 %v519, %v527
        %v600 = vmul.f32 %v520, %v528
        %v601 = vmul.f32 %v521, %v529
        %v602 = vmul.f32 %v522, %v530
        %v603 = vmul.f32 %v595, %v587
        %v604 = vmul.f32 %v596, %v588
        %v605 = vmul.f32 %v597, %v589
        %v606 = vmul.f32 %v598, %v590
        %v607 = vmul.f32 %v599, %v591
        %v608 = vmul.f32 %v600, %v592
        %v609 = vmul.f32 %v601, %v593
        %v610 = vmul.f32 %v602, %v594
        %v611 = vadd.f32 %v515, %v603
        %v612 = vadd.f32 %v516, %v604
        %v613 = vadd.f32 %v517, %v605
        %v614 = vadd.f32 %v518, %v606
        %v615 = vadd.f32 %v519, %v607
        %v616 = vadd.f32 %v520, %v608
        %v617 = vadd.f32 %v521, %v609
        %v618 = vadd.f32 %v522, %v610
        %v619 = vmul.f32 %v467, 0.5
        %v620 = vmul.f32 %v468, 0.5
        %v621 = vmul.f32 %v469, 0.5
        %v622 = vmul.f32 %v470, 0.5
        %v623 = vmul.f32 %v471, 0.5
        %v624 = vmul.f32 %v472, 0.5
        %v625 = vmul.f32 %v473, 0.5
        %v626 = vmul.f32 %v474, 0.5
        %v627 = vfloor.f32 %v619
        %v628 = vfloor.f32 %v620
        %v629 = vfloor.f32 %v621
        %v630 = vfloor.f32 %v622
        %v631 = vfloor.f32 %v623
        %v632 = vfloor.f32 %v624
        %v633 = vfloor.f32 %v625
        %v634 = vfloor.f32 %v626
        %v635 = vmul.f32 %v627, 2.0
        %v636 = vmul.f32 %v628, 2.0
        %v637 = vmul.f32 %v629, 2.0
        %v638 = vmul.f32 %v630, 2.0
        %v639 = vmul.f32 %v631, 2.0
        %v640 = vmul.f32 %v632, 2.0
        %v641 = vmul.f32 %v633, 2.0
        %v642 = vmul.f32 %v634, 2.0
        %v643 = vsub.f32 %v467, %v635
        %v644 = vsub.f32 %v468, %v636
        %v645 = vsub.f32 %v469, %v637
        %v646 = vsub.f32 %v470, %v638
        %v647 = vsub.f32 %v471, %v639
        %v648 = vsub.f32 %v472, %v640
        %v649 = vsub.f32 %v473, %v641
        %v650 = vsub.f32 %v474, %v642
        %v651 = vmul.f32 %v643, 2.0
        %v652 = vmul.f32 %v644, 2.0
        %v653 = vmul.f32 %v645, 2.0
        %v654 = vmul.f32 %v646, 2.0
        %v655 = vmul.f32 %v647, 2.0
        %v656 = vmul.f32 %v648, 2.0
        %v657 = vmul.f32 %v649, 2.0
        %v658 = vmul.f32 %v650, 2.0
        %v659 = vsub.f32 1.0, %v651
        %v660 = vsub.f32 1.0, %v652
        %v661 = vsub.f32 1.0, %v653
        %v662 = vsub.f32 1.0, %v654
        %v663 = vsub.f32 1.0, %v655
        %v664 = vsub.f32 1.0, %v656
        %v665 = vsub.f32 1.0, %v657
        %v666 = vsub.f32 1.0, %v658
        %v667 = vmul.f32 %v659, %v611
        %v668 = vmul.f32 %v660, %v612
        %v669 = vmul.f32 %v661, %v613
        %v670 = vmul.f32 %v662, %v614
        %v671 = vmul.f32 %v663, %v615
        %v672 = vmul.f32 %v664, %v616
        %v673 = vmul.f32 %v665, %v617
        %v674 = vmul.f32 %v666, %v618
        %v675 = vld [vmem:[%s4] sm:$0xff]
        %v676 = vld [vmem:[%s4 + $0x8] sm:$0xff]
        %v677 = vld [vmem:[%s4 + $0x10] sm:$0xff]
        %v678 = vld [vmem:[%s4 + $0x18] sm:$0xff]
        %v679 = vld [vmem:[%s5] sm:$0xff]
        %v680 = vld [vmem:[%s5 + $0x8] sm:$0xff]
        %v681 = vld [vmem:[%s5 + $0x10] sm:$0xff]
        %v682 = vld [vmem:[%s5 + $0x18] sm:$0xff]
        %684 = vset.pattern.permute.xlu0 0
        %685 = vperm.xlu0 %684, %v679
        %v686 = vpop.permute.xlu0 %685
        %689 = vset.pattern.permute.xlu0 0
        %690 = vperm.xlu0 %689, %v680
        %v691 = vpop.permute.xlu0 %690
        %694 = vset.pattern.permute.xlu0 0
        %695 = vperm.xlu0 %694, %v681
        %v696 = vpop.permute.xlu0 %695
        %699 = vset.pattern.permute.xlu0 0
        %700 = vperm.xlu0 %699, %v682
        %v701 = vpop.permute.xlu0 %700
        %vm703 = vcmask 261120
        %v705 = vsel %vm703, %v675, 0
        %v708 = vsel %vm703, %v676, 0
        %v711 = vsel %vm703, %v677, 0
        %v714 = vsel %vm703, %v678, 0
        %716 = vmatprep.subr.mxu0 0.0
        %717 = vmatpush1.msra.mxu0 0.0
        %718 = vmatprep.subr.mxu0 0.0
        %719 = vmatpush1.msra.mxu0 0.0
        %720 = vmatprep.subr.mxu0 0.0
        %721 = vmatpush1.msra.mxu0 0.0
        %722 = vmatprep.subr.mxu0 0.0
        %723 = vmatpush1.msra.mxu0 0.0
        %724 = vmatprep.subr.mxu0 0.0
        %725 = vmatpush1.msra.mxu0 0.0
        %726 = vmatprep.subr.mxu0 0.0
        %727 = vmatpush1.msra.mxu0 0.0
        %728 = vmatprep.subr.mxu0 0.0
        %729 = vmatpush1.msra.mxu0 0.0
        %730 = vmatprep.subr.mxu0 0.0
        %731 = vmatpush1.msra.mxu0 0.0
        %732 = vmatprep.subr.mxu0 0.0
        %733 = vmatpush1.msra.mxu0 0.0
        %734 = vmatprep.subr.mxu0 0.0
        %735 = vmatpush1.msra.mxu0 0.0
        %736 = vmatprep.subr.mxu0 0.0
        %737 = vmatpush1.msra.mxu0 0.0
        %738 = vmatprep.subr.mxu0 0.0
        %739 = vmatpush1.msra.mxu0 0.0
        %740 = vmatprep.subr.mxu0 %v674
        %741 = vmatpush1.msra.mxu0 %v673
        %742 = vmatprep.subr.mxu0 %v672
        %743 = vmatpush1.msra.mxu0 %v671
        %744 = vmatprep.subr.mxu0 %v670
        %745 = vmatpush1.msra.mxu0 %v669
        %746 = vmatprep.subr.mxu0 %v668
        %747 = vmatpush1.msra.mxu0 %v667
        %748 = vmatprep.subr.mxu0 0.0
        %749 = vmatpush2.msra.mxu0 0.0
        %750 = vmatprep.subr.mxu0 0.0
        %751 = vmatpush2.msra.mxu0 0.0
        %752 = vmatprep.subr.mxu0 0.0
        %753 = vmatpush2.msra.mxu0 0.0
        %754 = vmatprep.subr.mxu0 0.0
        %755 = vmatpush2.msra.mxu0 0.0
        %756 = vmatprep.subr.mxu0 0.0
        %757 = vmatpush2.msra.mxu0 0.0
        %758 = vmatprep.subr.mxu0 0.0
        %759 = vmatpush2.msra.mxu0 0.0
        %760 = vmatprep.subr.mxu0 0.0
        %761 = vmatpush2.msra.mxu0 0.0
        %762 = vmatprep.subr.mxu0 0.0
        %763 = vmatpush2.msra.mxu0 0.0
        %764 = vmatprep.subr.mxu0 0.0
        %765 = vmatpush2.msra.mxu0 0.0
        %766 = vmatprep.subr.mxu0 0.0
        %767 = vmatpush2.msra.mxu0 0.0
        %768 = vmatprep.subr.mxu0 0.0
        %769 = vmatpush2.msra.mxu0 0.0
        %770 = vmatprep.subr.mxu0 0.0
        %771 = vmatpush2.msra.mxu0 0.0
        %772 = vmatprep.subr.mxu0 0.0
        %773 = vmatpush2.msra.mxu0 0.0
        %774 = vmatprep.subr.mxu0 0.0
        %775 = vmatpush2.msra.mxu0 0.0
        %776 = vmatprep.subr.mxu0 0.0
        %777 = vmatpush2.msra.mxu0 0.0
        %778 = vmatprep.subr.mxu0 0.0
        %779 = vmatpush2.msra.mxu0 0.0
        %780 = vmatprep.mubr.f32.mxu0 0.0
        %781 = vmatmul.mubr.f32.gmra.mxu0 %v705
        %v782 = vpop.f32.mrf.mxu0
        %v783 = vadd.f32 %v686, %v782
        %v784 = vpop.f32.mrf.mxu0
        %v785 = vadd.f32 %v686, %v784
        %786 = vmatprep.mubr.f32.mxu0 0.0
        %787 = vmatmul.mubr.f32.gmra.mxu0 %v708
        %v788 = vpop.f32.mrf.mxu0
        %v789 = vadd.f32 %v691, %v788
        %v790 = vpop.f32.mrf.mxu0
        %v791 = vadd.f32 %v691, %v790
        %792 = vmatprep.mubr.f32.mxu0 0.0
        %793 = vmatmul.mubr.f32.gmra.mxu0 %v711
        %v794 = vpop.f32.mrf.mxu0
        %v795 = vadd.f32 %v696, %v794
        %v796 = vpop.f32.mrf.mxu0
        %v797 = vadd.f32 %v696, %v796
        %798 = vmatprep.mubr.f32.mxu0 0.0
        %799 = vmatmul.mubr.f32.gmra.mxu0 %v714
        %v800 = vpop.f32.mrf.mxu0
        %v801 = vadd.f32 %v701, %v800
        %v802 = vpop.f32.mrf.mxu0
        %v803 = vadd.f32 %v701, %v802
        %804 = vdwg.mxu0
        %v805 = vmul.f32 %v783, 0.31830987
        %v806 = vmul.f32 %v785, 0.31830987
        %v807 = vmul.f32 %v789, 0.31830987
        %v808 = vmul.f32 %v791, 0.31830987
        %v809 = vmul.f32 %v795, 0.31830987
        %v810 = vmul.f32 %v797, 0.31830987
        %v811 = vmul.f32 %v801, 0.31830987
        %v812 = vmul.f32 %v803, 0.31830987
        %v813 = vadd.f32 %v805, 0.5
        %v814 = vadd.f32 %v806, 0.5
        %v815 = vadd.f32 %v807, 0.5
        %v816 = vadd.f32 %v808, 0.5
        %v817 = vadd.f32 %v809, 0.5
        %v818 = vadd.f32 %v810, 0.5
        %v819 = vadd.f32 %v811, 0.5
        %v820 = vadd.f32 %v812, 0.5
        %v821 = vfloor.f32 %v813
        %v822 = vfloor.f32 %v814
        %v823 = vfloor.f32 %v815
        %v824 = vfloor.f32 %v816
        %v825 = vfloor.f32 %v817
        %v826 = vfloor.f32 %v818
        %v827 = vfloor.f32 %v819
        %v828 = vfloor.f32 %v820
        %v829 = vmul.f32 %v821, 3.140625
        %v830 = vmul.f32 %v822, 3.140625
        %v831 = vmul.f32 %v823, 3.140625
        %v832 = vmul.f32 %v824, 3.140625
        %v833 = vmul.f32 %v825, 3.140625
        %v834 = vmul.f32 %v826, 3.140625
        %v835 = vmul.f32 %v827, 3.140625
        %v836 = vmul.f32 %v828, 3.140625
        %v837 = vsub.f32 %v783, %v829
        %v838 = vsub.f32 %v785, %v830
        %v839 = vsub.f32 %v789, %v831
        %v840 = vsub.f32 %v791, %v832
        %v841 = vsub.f32 %v795, %v833
        %v842 = vsub.f32 %v797, %v834
        %v843 = vsub.f32 %v801, %v835
        %v844 = vsub.f32 %v803, %v836
        %v845 = vmul.f32 %v821, 0.00096702576
        %v846 = vmul.f32 %v822, 0.00096702576
        %v847 = vmul.f32 %v823, 0.00096702576
        %v848 = vmul.f32 %v824, 0.00096702576
        %v849 = vmul.f32 %v825, 0.00096702576
        %v850 = vmul.f32 %v826, 0.00096702576
        %v851 = vmul.f32 %v827, 0.00096702576
        %v852 = vmul.f32 %v828, 0.00096702576
        %v853 = vsub.f32 %v837, %v845
        %v854 = vsub.f32 %v838, %v846
        %v855 = vsub.f32 %v839, %v847
        %v856 = vsub.f32 %v840, %v848
        %v857 = vsub.f32 %v841, %v849
        %v858 = vsub.f32 %v842, %v850
        %v859 = vsub.f32 %v843, %v851
        %v860 = vsub.f32 %v844, %v852
        %v861 = vmul.f32 %v821, 6.277114e-07
        %v862 = vmul.f32 %v822, 6.277114e-07
        %v863 = vmul.f32 %v823, 6.277114e-07
        %v864 = vmul.f32 %v824, 6.277114e-07
        %v865 = vmul.f32 %v825, 6.277114e-07
        %v866 = vmul.f32 %v826, 6.277114e-07
        %v867 = vmul.f32 %v827, 6.277114e-07
        %v868 = vmul.f32 %v828, 6.277114e-07
        %v869 = vsub.f32 %v853, %v861
        %v870 = vsub.f32 %v854, %v862
        %v871 = vsub.f32 %v855, %v863
        %v872 = vsub.f32 %v856, %v864
        %v873 = vsub.f32 %v857, %v865
        %v874 = vsub.f32 %v858, %v866
        %v875 = vsub.f32 %v859, %v867
        %v876 = vsub.f32 %v860, %v868
        %v877 = vmul.f32 %v869, %v869
        %v878 = vmul.f32 %v870, %v870
        %v879 = vmul.f32 %v871, %v871
        %v880 = vmul.f32 %v872, %v872
        %v881 = vmul.f32 %v873, %v873
        %v882 = vmul.f32 %v874, %v874
        %v883 = vmul.f32 %v875, %v875
        %v884 = vmul.f32 %v876, %v876
        %v885 = vmul.f32 %v877, -2.5052108e-08
        %v886 = vmul.f32 %v878, -2.5052108e-08
        %v887 = vmul.f32 %v879, -2.5052108e-08
        %v888 = vmul.f32 %v880, -2.5052108e-08
        %v889 = vmul.f32 %v881, -2.5052108e-08
        %v890 = vmul.f32 %v882, -2.5052108e-08
        %v891 = vmul.f32 %v883, -2.5052108e-08
        %v892 = vmul.f32 %v884, -2.5052108e-08
        %v893 = vadd.f32 %v885, 2.7557319e-06
        %v894 = vadd.f32 %v886, 2.7557319e-06
        %v895 = vadd.f32 %v887, 2.7557319e-06
        %v896 = vadd.f32 %v888, 2.7557319e-06
        %v897 = vadd.f32 %v889, 2.7557319e-06
        %v898 = vadd.f32 %v890, 2.7557319e-06
        %v899 = vadd.f32 %v891, 2.7557319e-06
        %v900 = vadd.f32 %v892, 2.7557319e-06
        %v901 = vmul.f32 %v893, %v877
        %v902 = vmul.f32 %v894, %v878
        %v903 = vmul.f32 %v895, %v879
        %v904 = vmul.f32 %v896, %v880
        %v905 = vmul.f32 %v897, %v881
        %v906 = vmul.f32 %v898, %v882
        %v907 = vmul.f32 %v899, %v883
        %v908 = vmul.f32 %v900, %v884
        %v909 = vadd.f32 %v901, -0.0001984127
        %v910 = vadd.f32 %v902, -0.0001984127
        %v911 = vadd.f32 %v903, -0.0001984127
        %v912 = vadd.f32 %v904, -0.0001984127
        %v913 = vadd.f32 %v905, -0.0001984127
        %v914 = vadd.f32 %v906, -0.0001984127
        %v915 = vadd.f32 %v907, -0.0001984127
        %v916 = vadd.f32 %v908, -0.0001984127
        %v917 = vmul.f32 %v909, %v877
        %v918 = vmul.f32 %v910, %v878
        %v919 = vmul.f32 %v911, %v879
        %v920 = vmul.f32 %v912, %v880
        %v921 = vmul.f32 %v913, %v881
        %v922 = vmul.f32 %v914, %v882
        %v923 = vmul.f32 %v915, %v883
        %v924 = vmul.f32 %v916, %v884
        %v925 = vadd.f32 %v917, 0.008333334
        %v926 = vadd.f32 %v918, 0.008333334
        %v927 = vadd.f32 %v919, 0.008333334
        %v928 = vadd.f32 %v920, 0.008333334
        %v929 = vadd.f32 %v921, 0.008333334
        %v930 = vadd.f32 %v922, 0.008333334
        %v931 = vadd.f32 %v923, 0.008333334
        %v932 = vadd.f32 %v924, 0.008333334
        %v933 = vmul.f32 %v925, %v877
        %v934 = vmul.f32 %v926, %v878
        %v935 = vmul.f32 %v927, %v879
        %v936 = vmul.f32 %v928, %v880
        %v937 = vmul.f32 %v929, %v881
        %v938 = vmul.f32 %v930, %v882
        %v939 = vmul.f32 %v931, %v883
        %v940 = vmul.f32 %v932, %v884
        %v941 = vadd.f32 %v933, -0.16666667
        %v942 = vadd.f32 %v934, -0.16666667
        %v943 = vadd.f32 %v935, -0.16666667
        %v944 = vadd.f32 %v936, -0.16666667
        %v945 = vadd.f32 %v937, -0.16666667
        %v946 = vadd.f32 %v938, -0.16666667
        %v947 = vadd.f32 %v939, -0.16666667
        %v948 = vadd.f32 %v940, -0.16666667
        %v949 = vmul.f32 %v869, %v877
        %v950 = vmul.f32 %v870, %v878
        %v951 = vmul.f32 %v871, %v879
        %v952 = vmul.f32 %v872, %v880
        %v953 = vmul.f32 %v873, %v881
        %v954 = vmul.f32 %v874, %v882
        %v955 = vmul.f32 %v875, %v883
        %v956 = vmul.f32 %v876, %v884
        %v957 = vmul.f32 %v949, %v941
        %v958 = vmul.f32 %v950, %v942
        %v959 = vmul.f32 %v951, %v943
        %v960 = vmul.f32 %v952, %v944
        %v961 = vmul.f32 %v953, %v945
        %v962 = vmul.f32 %v954, %v946
        %v963 = vmul.f32 %v955, %v947
        %v964 = vmul.f32 %v956, %v948
        %v965 = vadd.f32 %v869, %v957
        %v966 = vadd.f32 %v870, %v958
        %v967 = vadd.f32 %v871, %v959
        %v968 = vadd.f32 %v872, %v960
        %v969 = vadd.f32 %v873, %v961
        %v970 = vadd.f32 %v874, %v962
        %v971 = vadd.f32 %v875, %v963
        %v972 = vadd.f32 %v876, %v964
        %v973 = vmul.f32 %v821, 0.5
        %v974 = vmul.f32 %v822, 0.5
        %v975 = vmul.f32 %v823, 0.5
        %v976 = vmul.f32 %v824, 0.5
        %v977 = vmul.f32 %v825, 0.5
        %v978 = vmul.f32 %v826, 0.5
        %v979 = vmul.f32 %v827, 0.5
        %v980 = vmul.f32 %v828, 0.5
        %v981 = vfloor.f32 %v973
        %v982 = vfloor.f32 %v974
        %v983 = vfloor.f32 %v975
        %v984 = vfloor.f32 %v976
        %v985 = vfloor.f32 %v977
        %v986 = vfloor.f32 %v978
        %v987 = vfloor.f32 %v979
        %v988 = vfloor.f32 %v980
        %v989 = vmul.f32 %v981, 2.0
        %v990 = vmul.f32 %v982, 2.0
        %v991 = vmul.f32 %v983, 2.0
        %v992 = vmul.f32 %v984, 2.0
        %v993 = vmul.f32 %v985, 2.0
        %v994 = vmul.f32 %v986, 2.0
        %v995 = vmul.f32 %v987, 2.0
        %v996 = vmul.f32 %v988, 2.0
        %v997 = vsub.f32 %v821, %v989
        %v998 = vsub.f32 %v822, %v990
        %v999 = vsub.f32 %v823, %v991
        %v1000 = vsub.f32 %v824, %v992
        %v1001 = vsub.f32 %v825, %v993
        %v1002 = vsub.f32 %v826, %v994
        %v1003 = vsub.f32 %v827, %v995
        %v1004 = vsub.f32 %v828, %v996
        %v1005 = vmul.f32 %v997, 2.0
        %v1006 = vmul.f32 %v998, 2.0
        %v1007 = vmul.f32 %v999, 2.0
        %v1008 = vmul.f32 %v1000, 2.0
        %v1009 = vmul.f32 %v1001, 2.0
        %v1010 = vmul.f32 %v1002, 2.0
        %v1011 = vmul.f32 %v1003, 2.0
        %v1012 = vmul.f32 %v1004, 2.0
        %v1013 = vsub.f32 1.0, %v1005
        %v1014 = vsub.f32 1.0, %v1006
        %v1015 = vsub.f32 1.0, %v1007
        %v1016 = vsub.f32 1.0, %v1008
        %v1017 = vsub.f32 1.0, %v1009
        %v1018 = vsub.f32 1.0, %v1010
        %v1019 = vsub.f32 1.0, %v1011
        %v1020 = vsub.f32 1.0, %v1012
        %v1021 = vmul.f32 %v1013, %v965
        %v1022 = vmul.f32 %v1014, %v966
        %v1023 = vmul.f32 %v1015, %v967
        %v1024 = vmul.f32 %v1016, %v968
        %v1025 = vmul.f32 %v1017, %v969
        %v1026 = vmul.f32 %v1018, %v970
        %v1027 = vmul.f32 %v1019, %v971
        %v1028 = vmul.f32 %v1020, %v972
        %v1029 = vld [vmem:[%s6] sm:$0x1]
        %v1030 = vld [vmem:[#allocation2] sm:$0x1]
        %1032 = vset.pattern.permute.xlu0 0
        %1033 = vperm.xlu0 %1032, %v1030
        %v1034 = vpop.permute.xlu0 %1033
        %v1036 = vlaneseq
        %v1037 = vshrl.u32 %v1036, 7
        %v1038 = vsub.s32 0, %v1037
        %v1039 = vrot.slane %v1034, %v1038
        %v1041 = vsel %vm703, %v1029, 0
        %1043 = vmatprep.subr.mxu0 0.0
        %1044 = vmatpush1.msra.mxu0 0.0
        %1045 = vmatprep.subr.mxu0 0.0
        %1046 = vmatpush1.msra.mxu0 0.0
        %1047 = vmatprep.subr.mxu0 0.0
        %1048 = vmatpush1.msra.mxu0 0.0
        %1049 = vmatprep.subr.mxu0 0.0
        %1050 = vmatpush1.msra.mxu0 0.0
        %1051 = vmatprep.subr.mxu0 0.0
        %1052 = vmatpush1.msra.mxu0 0.0
        %1053 = vmatprep.subr.mxu0 0.0
        %1054 = vmatpush1.msra.mxu0 0.0
        %1055 = vmatprep.subr.mxu0 0.0
        %1056 = vmatpush1.msra.mxu0 0.0
        %1057 = vmatprep.subr.mxu0 0.0
        %1058 = vmatpush1.msra.mxu0 0.0
        %1059 = vmatprep.subr.mxu0 0.0
        %1060 = vmatpush1.msra.mxu0 0.0
        %1061 = vmatprep.subr.mxu0 0.0
        %1062 = vmatpush1.msra.mxu0 0.0
        %1063 = vmatprep.subr.mxu0 0.0
        %1064 = vmatpush1.msra.mxu0 0.0
        %1065 = vmatprep.subr.mxu0 0.0
        %1066 = vmatpush1.msra.mxu0 0.0
        %1067 = vmatprep.subr.mxu0 %v1028
        %1068 = vmatpush1.msra.mxu0 %v1027
        %1069 = vmatprep.subr.mxu0 %v1026
        %1070 = vmatpush1.msra.mxu0 %v1025
        %1071 = vmatprep.subr.mxu0 %v1024
        %1072 = vmatpush1.msra.mxu0 %v1023
        %1073 = vmatprep.subr.mxu0 %v1022
        %1074 = vmatpush1.msra.mxu0 %v1021
        %1075 = vmatprep.subr.mxu0 0.0
        %1076 = vmatpush2.msra.mxu0 0.0
        %1077 = vmatprep.subr.mxu0 0.0
        %1078 = vmatpush2.msra.mxu0 0.0
        %1079 = vmatprep.subr.mxu0 0.0
        %1080 = vmatpush2.msra.mxu0 0.0
        %1081 = vmatprep.subr.mxu0 0.0
        %1082 = vmatpush2.msra.mxu0 0.0
        %1083 = vmatprep.subr.mxu0 0.0
        %1084 = vmatpush2.msra.mxu0 0.0
        %1085 = vmatprep.subr.mxu0 0.0
        %1086 = vmatpush2.msra.mxu0 0.0
        %1087 = vmatprep.subr.mxu0 0.0
        %1088 = vmatpush2.msra.mxu0 0.0
        %1089 = vmatprep.subr.mxu0 0.0
        %1090 = vmatpush2.msra.mxu0 0.0
        %1091 = vmatprep.subr.mxu0 0.0
        %1092 = vmatpush2.msra.mxu0 0.0
        %1093 = vmatprep.subr.mxu0 0.0
        %1094 = vmatpush2.msra.mxu0 0.0
        %1095 = vmatprep.subr.mxu0 0.0
        %1096 = vmatpush2.msra.mxu0 0.0
        %1097 = vmatprep.subr.mxu0 0.0
        %1098 = vmatpush2.msra.mxu0 0.0
        %1099 = vmatprep.subr.mxu0 0.0
        %1100 = vmatpush2.msra.mxu0 0.0
        %1101 = vmatprep.subr.mxu0 0.0
        %1102 = vmatpush2.msra.mxu0 0.0
        %1103 = vmatprep.subr.mxu0 0.0
        %1104 = vmatpush2.msra.mxu0 0.0
        %1105 = vmatprep.subr.mxu0 0.0
        %1106 = vmatpush2.msra.mxu0 0.0
        %1107 = vmatprep.mubr.f32.mxu0 0.0
        %1108 = vmatmul.mubr.f32.gmra.mxu0 %v1041
        %v1109 = vpop.f32.mrf.mxu0
        %v1110 = vadd.f32 %v1039, %v1109
        %v1111 = vpop.f32.mrf.mxu0
        %v1112 = vadd.f32 %v1039, %v1111
        %1113 = vdwg.mxu0
        %v1116 = vcombine.low %v1110, %v1112
        %v1118 = vunpack.c.l.s4 1966171168
        %v1119 = vunpack.c.0.s8 %v1118
        %v1120 = vlaneseq
        %v1121 = vshrl.u32 %v1120, 7
        %v1122 = vsub.s32 %v1119, %v1121
        %v1123 = vrot.slane %v1116, %v1122
        %v1125 = vunpack.c.l.s4 1966171168
        %v1126 = vunpack.c.0.s8 %v1125
        %v1127 = vlaneseq
        %v1128 = vshrl.u32 %v1127, 7
        %v1129 = vsub.s32 %v1126, %v1128
        %v1130 = vrot.slane %v1123, %v1129
        %v1132 = vlaneseq
        %vm1133 = vcmp.ge.s32.totalorder %v1132, 0
        %vm1134 = vcmp.lt.s32.totalorder %v1132, 256
        %vm1135 = vmand %vm1133, %vm1134
        %1136 = vst.msk [vmem:[%s301] sm:$0x3] %vm1135, %v1130
        %s1137 = sand.u32 %s205, 1
        %s1138 = scalar_lea.sflag [#allocation4], %s1137
        %s1139 = sand.u32 %s205, 1
        %s1140 = smul.addr %s1139, 2
        %s1141 = scalar_lea.vmem [#allocation3], %s1140
        // Predicated region
        $region53: #{tpu_custom_call.1} parent=51 // pred_check
          %p1142 = pneg %p215
        $region54: #{tpu_custom_call.1} parent=51 // pred_check_branch
          %1144 = sbr.rel (%p1142) target = $region56
        $region55: #{tpu_custom_call.1} parent=51 // pred_region
          %s1145 = smul.u32 2, %s24
          %s1147 = ssub.s32 32, 32
          %1148 = vsyncadd %s1138, %s1147
          %s1149 = smul.addr %s1145, 16
          %s1150 = scalar_lea.hbm %s8, %s1149
          %s1152 = sshll.u32 %s1141, 4
          %s1153 = int_to_ptr.vmem [resolvable:$true] %s1152
          %1155 = dma.vmem_to_hbm [thread:$0]  %s1153, 32, %s1150, %s1138
        $region56: #{tpu_custom_call.1} parent=51 // pred_fallthru
          _
      $region52: #{tpu_custom_call.1} parent=5 // pred_fallthru
        _
      %p1156 = scmp.le.s32.totalorder 2, %s19
      // Predicated region
      $region57: #{tpu_custom_call.1} parent=5 // pred_check
        %p1157 = pneg %p1156
      $region58: #{tpu_custom_call.1} parent=5 // pred_check_branch
        %1159 = sbr.rel (%p1157) target = $region60
      $region59: #{tpu_custom_call.1} parent=5 // pred_region
        %s1160 = ssub.s32 %s19, 2
        // Predicated region
        $region61: #{tpu_custom_call.1} parent=59 // pred_check
          %p1161 = pneg %p221
        $region62: #{tpu_custom_call.1} parent=59 // pred_check_branch
          %1163 = sbr.rel (%p1161) target = $region64
        $region63: #{tpu_custom_call.1} parent=59 // pred_region
          %s1164 = sand.u32 %s206, 1
          %s1165 = scalar_lea.sflag [#allocation4], %s1164
          %s1166 = sand.u32 %s206, 1
          %s1167 = smul.addr %s1166, 2
          %s1168 = scalar_lea.vmem [#allocation3], %s1167
          %1169 = dma.done %s1165, 32
        $region64: #{tpu_custom_call.1} parent=59 // pred_fallthru
          _
      $region60: #{tpu_custom_call.1} parent=5 // pred_fallthru
        _
    $region6: #{tpu_custom_call.1} parent=1 // loop_footer
      %s23 = sadd.s32 1, %s19
    $region7: #{tpu_custom_call.1} parent=1 // loop_footer_branch
      %18 = sbr.rel target = $region3
    $region8: #{tpu_custom_call.1} parent=1 // loop_exit
      _
    %1170 = vsyncpa [#allocation4], 1
    %s1171 = scalar_lea.sflag [#allocation4], 1
    %1172 = vsyncpa %s1171, 1

</llo_original>
